<compile_context>
chip_gen: v5e
topology: v5e:2x2
jax: 0.10.0
libtpu: 0.0.40
codegen_flags: <defaults>
</compile_context>

<pallas_src>
import jax
import jax.numpy as jnp
from jax.experimental import pallas as pl
from jax.experimental.pallas import tpu as pltpu

IN_F, H1, H2, OUT = 28 * 28, 256, 64, 10   # true module sizes
H2_PAD, OUT_PAD = 128, 128                 # lane-aligned hidden/output widths


def mlp_kernel(x_ref, w1_ref, b1_ref, w2_ref, b2_ref, w3_ref, b3_ref, o_ref):
    # x tile: (TM, 784) f32 in VMEM; cast to bf16 so the MXU runs at bf16 rate.
    x = x_ref[...].astype(jnp.bfloat16)

    h1 = jnp.dot(x, w1_ref[...], preferred_element_type=jnp.float32)     # (TM, 256) f32
    h1 = jnp.maximum(h1 + b1_ref[...], 0.0).astype(jnp.bfloat16)         # bias+ReLU in f32

    h2 = jnp.dot(h1, w2_ref[...], preferred_element_type=jnp.float32)    # (TM, 128) f32
    h2 = jnp.maximum(h2 + b2_ref[...], 0.0).astype(jnp.bfloat16)         # bias+ReLU in f32

    h3 = jnp.dot(h2, w3_ref[...], preferred_element_type=jnp.float32)    # (TM, 128) f32
    o_ref[...] = (h3 + b3_ref[...]).astype(o_ref.dtype)                  # lane-dense bf16 store


def _pick_tile(batch, desired_tm):
    """Batch-tile size: multiple of 8 (sublane granularity), large enough to
    amortize the ~0.35us per-grid-step overhead, and split into >= 2 tiles
    whenever possible so the 'parallel' axis shards across v7x's two TCs."""
    tm = min(desired_tm, pl.cdiv(batch, 8) * 8)
    if pl.cdiv(batch, tm) == 1 and batch > 8:
        tm = pl.cdiv(pl.cdiv(batch, 2), 8) * 8   # force (at least) 2 grid tiles
    return tm


def net_forward(x, params, *, desired_tm=1024):
    """x: (B, 784) f32.  params: pre-transposed (in, out) bf16 weights / f32
    biases, zero-padded to lane-aligned widths.  Returns (B, 10) bf16 logits."""
    B = x.shape[0]
    tm = _pick_tile(B, desired_tm)
    grid = (pl.cdiv(B, tm),)     # partial edge tile handled by Pallas masking — no batch pad

    const = lambda i: (0, 0)     # same block every grid step -> fetched once, VMEM-resident

    out = pl.pallas_call(
        mlp_kernel,
        out_shape=jax.ShapeDtypeStruct((B, OUT_PAD), jnp.bfloat16),
        grid=grid,
        in_specs=[
            pl.BlockSpec((tm, IN_F), lambda i: (i, 0)),    # x tile (auto double-buffered)
            pl.BlockSpec((IN_F, H1), const),               # w1 (784, 256) bf16
            pl.BlockSpec((1, H1), const),                  # b1 (1, 256)   f32
            pl.BlockSpec((H1, H2_PAD), const),             # w2 (256, 128) bf16
            pl.BlockSpec((1, H2_PAD), const),              # b2 (1, 128)   f32
            pl.BlockSpec((H2_PAD, OUT_PAD), const),        # w3 (128, 128) bf16
            pl.BlockSpec((1, OUT_PAD), const),             # b3 (1, 128)   f32
        ],
        out_specs=pl.BlockSpec((tm, OUT_PAD), lambda i: (i, 0)),
        compiler_params=pltpu.CompilerParams(
            dimension_semantics=("parallel",),             # megacore batch sharding on v7x
            vmem_limit_bytes=32 * 1024 * 1024,             # tm=1024 footprint ~12 MiB; covers v5e's 16 MiB default
        ),
    )(x, params["w1"], params["b1"], params["w2"], params["b2"],
      params["w3"], params["b3"])

    # Only 10 of the 128 lane-padded columns are real logits.  Downstream code
    # can consume the padded (B, 128) buffer directly and skip this slice.
    return out[:, :OUT]


def init_params(key):
    """Mirror nn.Linear default init (uniform +/- 1/sqrt(fan_in)).

    Weights are stored pre-transposed as (in, out), zero-padded to lane-aligned
    widths and cast to bf16 (intentional numerics change vs fp32 PyTorch);
    biases stay f32.  Padded rows/columns are exactly zero, so the extra output
    lanes stay zero until sliced off.
    """
    def linear(key, fan_in, fan_out, in_pad, out_pad):
        kw, kb = jax.random.split(key)
        bound = 1.0 / float(fan_in) ** 0.5
        w = jax.random.uniform(kw, (fan_in, fan_out), jnp.float32, -bound, bound)
        b = jax.random.uniform(kb, (1, fan_out), jnp.float32, -bound, bound)
        w_p = jnp.zeros((in_pad, out_pad), jnp.float32).at[:fan_in, :fan_out].set(w)
        b_p = jnp.zeros((1, out_pad), jnp.float32).at[:, :fan_out].set(b)
        return w_p.astype(jnp.bfloat16), b_p

    k1, k2, k3 = jax.random.split(key, 3)
    w1, b1 = linear(k1, IN_F, H1, IN_F, H1)
    w2, b2 = linear(k2, H1, H2, H1, H2_PAD)
    w3, b3 = linear(k3, H2, OUT, H2_PAD, OUT_PAD)
    return {"w1": w1, "b1": b1, "w2": w2, "b2": b2, "w3": w3, "b3": b3}


def _reference(x, p):
    """Pure-JAX reference with the same bf16-weight / f32-accumulate numerics."""
    xb = x.astype(jnp.bfloat16)
    h1 = jnp.maximum(
        jnp.dot(xb, p["w1"], preferred_element_type=jnp.float32) + p["b1"], 0.0
    ).astype(jnp.bfloat16)
    h2 = jnp.maximum(
        jnp.dot(h1, p["w2"], preferred_element_type=jnp.float32) + p["b2"], 0.0
    ).astype(jnp.bfloat16)
    h3 = jnp.dot(h2, p["w3"], preferred_element_type=jnp.float32) + p["b3"]
    return h3.astype(jnp.bfloat16)[:, :OUT]


if __name__ == "__main__":
    key = jax.random.PRNGKey(0)
    kx, kp = jax.random.split(key)
    params = init_params(kp)

    # Small-batch smoke test: B=2 < 8 exercises the masked edge tile
    # (single 8-row block over a 2-row array).
    x_small = jax.random.normal(kx, (2, IN_F), dtype=jnp.float32)
    out_small = jax.block_until_ready(net_forward(x_small, params))
    ref_small = _reference(x_small, params)
    assert out_small.shape == (2, OUT)
    assert jnp.allclose(out_small.astype(jnp.float32), ref_small.astype(jnp.float32),
                        atol=2e-2, rtol=2e-2)

    # Ragged multi-tile path: B=300 -> two 152-row tiles (v7x megacore gets both),
    # last tile partially out-of-bounds (rows 300..303 masked on store).
    x_big = jax.random.normal(kx, (300, IN_F), dtype=jnp.float32)
    out_big = jax.block_until_ready(net_forward(x_big, params))
    ref_big = _reference(x_big, params)
    assert out_big.shape == (300, OUT)
    assert jnp.allclose(out_big.astype(jnp.float32), ref_big.astype(jnp.float32),
                        atol=2e-2, rtol=2e-2)

    print("KERNEL_OK")
</pallas_src>

<mosaic_0001>
module attributes {stable_mosaic.version = 11 : i64} {
  func.func @mlp_kernel(%arg0: i32, %arg1: memref<8x784xf32, #tpu.memory_space<vmem>>, %arg2: memref<784x256xbf16, #tpu.memory_space<vmem>>, %arg3: memref<1x256xf32, #tpu.memory_space<vmem>>, %arg4: memref<256x128xbf16, #tpu.memory_space<vmem>>, %arg5: memref<1x128xf32, #tpu.memory_space<vmem>>, %arg6: memref<128x128xbf16, #tpu.memory_space<vmem>>, %arg7: memref<1x128xf32, #tpu.memory_space<vmem>>, %arg8: memref<8x128xbf16, #tpu.memory_space<vmem>>) attributes {dimension_semantics = [#tpu.dimension_semantics<parallel>], iteration_bounds = array<i64: 1>, scalar_prefetch = 0 : i64, scratch_operands = 0 : i64, tpu.core_type = #tpu.core_type<tc>, window_params = [{transform_indices = @transform_0, window_bounds = array<i64: 8, 784>}, {pipeline_mode = #tpu.pipeline_mode<synchronous>, transform_indices = @transform_1, window_bounds = array<i64: 784, 256>}, {pipeline_mode = #tpu.pipeline_mode<synchronous>, transform_indices = @transform_2, window_bounds = array<i64: 1, 256>}, {pipeline_mode = #tpu.pipeline_mode<synchronous>, transform_indices = @transform_3, window_bounds = array<i64: 256, 128>}, {pipeline_mode = #tpu.pipeline_mode<synchronous>, transform_indices = @transform_4, window_bounds = array<i64: 1, 128>}, {pipeline_mode = #tpu.pipeline_mode<synchronous>, transform_indices = @transform_5, window_bounds = array<i64: 128, 128>}, {pipeline_mode = #tpu.pipeline_mode<synchronous>, transform_indices = @transform_6, window_bounds = array<i64: 1, 128>}, {transform_indices = @transform_7, window_bounds = array<i64: 8, 128>}]} {
    %c0 = arith.constant 0 : index
    %c0_0 = arith.constant 0 : index
    %0 = vector.load %arg1[%c0, %c0_0] : memref<8x784xf32, #tpu.memory_space<vmem>>, vector<8x784xf32>
    %1 = arith.truncf %0 : vector<8x784xf32> to vector<8x784xbf16>
    %c0_1 = arith.constant 0 : index
    %c0_2 = arith.constant 0 : index
    %2 = vector.load %arg2[%c0_1, %c0_2] : memref<784x256xbf16, #tpu.memory_space<vmem>>, vector<784x256xbf16>
    %cst = arith.constant dense<0.000000e+00> : vector<8x256xf32>
    %3 = tpu.matmul %1, %2, %cst {dimension_numbers = #tpu.dot_dimension_numbers<[1], [0], [0], [1], [0, 0, 1, 1], [], []>} : vector<8x784xbf16>, vector<784x256xbf16>, vector<8x256xf32> -> vector<8x256xf32>
    %c0_3 = arith.constant 0 : index
    %c0_4 = arith.constant 0 : index
    %4 = vector.load %arg3[%c0_3, %c0_4] : memref<1x256xf32, #tpu.memory_space<vmem>>, vector<1x256xf32>
    %5 = vector.broadcast %4 : vector<1x256xf32> to vector<8x256xf32>
    %6 = arith.addf %3, %5 : vector<8x256xf32>
    %cst_5 = arith.constant 0.000000e+00 : f32
    %7 = vector.broadcast %cst_5 : f32 to vector<8x256xf32>
    %8 = arith.maximumf %6, %7 : vector<8x256xf32>
    %9 = arith.truncf %8 : vector<8x256xf32> to vector<8x256xbf16>
    %c0_6 = arith.constant 0 : index
    %c0_7 = arith.constant 0 : index
    %10 = vector.load %arg4[%c0_6, %c0_7] : memref<256x128xbf16, #tpu.memory_space<vmem>>, vector<256x128xbf16>
    %cst_8 = arith.constant dense<0.000000e+00> : vector<8x128xf32>
    %11 = tpu.matmul %9, %10, %cst_8 {dimension_numbers = #tpu.dot_dimension_numbers<[1], [0], [0], [1], [0, 0, 1, 1], [], []>} : vector<8x256xbf16>, vector<256x128xbf16>, vector<8x128xf32> -> vector<8x128xf32>
    %c0_9 = arith.constant 0 : index
    %c0_10 = arith.constant 0 : index
    %12 = vector.load %arg5[%c0_9, %c0_10] : memref<1x128xf32, #tpu.memory_space<vmem>>, vector<1x128xf32>
    %13 = vector.broadcast %12 : vector<1x128xf32> to vector<8x128xf32>
    %14 = arith.addf %11, %13 : vector<8x128xf32>
    %cst_11 = arith.constant 0.000000e+00 : f32
    %15 = vector.broadcast %cst_11 : f32 to vector<8x128xf32>
    %16 = arith.maximumf %14, %15 : vector<8x128xf32>
    %17 = arith.truncf %16 : vector<8x128xf32> to vector<8x128xbf16>
    %c0_12 = arith.constant 0 : index
    %c0_13 = arith.constant 0 : index
    %18 = vector.load %arg6[%c0_12, %c0_13] : memref<128x128xbf16, #tpu.memory_space<vmem>>, vector<128x128xbf16>
    %cst_14 = arith.constant dense<0.000000e+00> : vector<8x128xf32>
    %19 = tpu.matmul %17, %18, %cst_14 {dimension_numbers = #tpu.dot_dimension_numbers<[1], [0], [0], [1], [0, 0, 1, 1], [], []>} : vector<8x128xbf16>, vector<128x128xbf16>, vector<8x128xf32> -> vector<8x128xf32>
    %c0_15 = arith.constant 0 : index
    %c0_16 = arith.constant 0 : index
    %20 = vector.load %arg7[%c0_15, %c0_16] : memref<1x128xf32, #tpu.memory_space<vmem>>, vector<1x128xf32>
    %21 = vector.broadcast %20 : vector<1x128xf32> to vector<8x128xf32>
    %22 = arith.addf %19, %21 : vector<8x128xf32>
    %23 = arith.truncf %22 : vector<8x128xf32> to vector<8x128xbf16>
    %c0_17 = arith.constant 0 : index
    %c0_18 = arith.constant 0 : index
    %24 = vector.load %arg8[%c0_17, %c0_18] : memref<8x128xbf16, #tpu.memory_space<vmem>>, vector<8x128xbf16>
    tpu.vector_store %arg8[%c0_17, %c0_18], %23 {strides = array<i32>} : memref<8x128xbf16, #tpu.memory_space<vmem>>, vector<8x128xbf16>,
    return
  }
  func.func @transform_0(%arg0: i32) -> (i32, i32) {
    %c0_i32 = arith.constant 0 : i32
    %c0_i32_0 = arith.constant 0 : i32
    return %arg0, %c0_i32 : i32, i32
  }
  func.func @transform_1(%arg0: i32) -> (i32, i32) {
    %c0_i32 = arith.constant 0 : i32
    %c0_i32_0 = arith.constant 0 : i32
    %c0_i32_1 = arith.constant 0 : i32
    return %c0_i32, %c0_i32_0 : i32, i32
  }
  func.func @transform_2(%arg0: i32) -> (i32, i32) {
    %c0_i32 = arith.constant 0 : i32
    %c0_i32_0 = arith.constant 0 : i32
    %c0_i32_1 = arith.constant 0 : i32
    return %c0_i32, %c0_i32_0 : i32, i32
  }
  func.func @transform_3(%arg0: i32) -> (i32, i32) {
    %c0_i32 = arith.constant 0 : i32
    %c0_i32_0 = arith.constant 0 : i32
    %c0_i32_1 = arith.constant 0 : i32
    return %c0_i32, %c0_i32_0 : i32, i32
  }
  func.func @transform_4(%arg0: i32) -> (i32, i32) {
    %c0_i32 = arith.constant 0 : i32
    %c0_i32_0 = arith.constant 0 : i32
    %c0_i32_1 = arith.constant 0 : i32
    return %c0_i32, %c0_i32_0 : i32, i32
  }
  func.func @transform_5(%arg0: i32) -> (i32, i32) {
    %c0_i32 = arith.constant 0 : i32
    %c0_i32_0 = arith.constant 0 : i32
    %c0_i32_1 = arith.constant 0 : i32
    return %c0_i32, %c0_i32_0 : i32, i32
  }
  func.func @transform_6(%arg0: i32) -> (i32, i32) {
    %c0_i32 = arith.constant 0 : i32
    %c0_i32_0 = arith.constant 0 : i32
    %c0_i32_1 = arith.constant 0 : i32
    return %c0_i32, %c0_i32_0 : i32, i32
  }
  func.func @transform_7(%arg0: i32) -> (i32, i32) {
    %c0_i32 = arith.constant 0 : i32
    %c0_i32_0 = arith.constant 0 : i32
    return %arg0, %c0_i32 : i32, i32
  }
}

</mosaic_0001>

<llo_original>
// kernel: tpu_custom_call.1
$region0: #{tpu_custom_call.1}
  #allocation0 [shape = 'u32[]', space=smem, size = 0x4, offset = 0x4, fixed_abs, tag = 'smem constant byte address 0x4 - core index']
  #allocation1 [shape = 'u32[72,128]{1,0:T(1,128)}', space=vmem, size = 0x9000, scoped, tag = 'internal scratch']
  %s0 = inlined_call_operand.hbm [shape: f32[2,784], index: 0, kind: input, shape index: {}]
  %s1 = inlined_call_operand.hbm [shape: bf16[784,256], index: 1, kind: input, shape index: {}]
  %s2 = inlined_call_operand.hbm [shape: f32[1,256], index: 2, kind: input, shape index: {}]
  %s3 = inlined_call_operand.hbm [shape: bf16[256,128], index: 3, kind: input, shape index: {}]
  %s4 = inlined_call_operand.vmem [shape: f32[1,128], index: 4, kind: input, shape index: {}]
  %s5 = inlined_call_operand.hbm [shape: bf16[128,128], index: 5, kind: input, shape index: {}]
  %s6 = inlined_call_operand.vmem [shape: f32[1,128], index: 6, kind: input, shape index: {}]
  %s7 = inlined_call_operand.hbm [shape: bf16[2,128], index: 7, kind: output, shape index: {}]
  %s8 = sld [smem:[#allocation0]]
  $region58: #{tpu_custom_call.1} parent=0
    _
  %s10 = ssub.s32 1, %s8
  %s11 = scalar_select 0, %s10, %s8
  $region1: #{tpu_custom_call.1} parent=0
    #allocation2 [shape = 'u8[28672]{0}', space=vmem, size = 0x7000, scoped, tag = 'input window, operand 0, single buffered']
    #allocation3 [shape = 's32[1]{0}', space=sflag, size = 0x4, scoped, tag = 'scoped memory for tpu_custom_call.1']
    #allocation4 [shape = 's32[1]{0}', space=sflag, size = 0x4, scoped, tag = 'scoped memory for tpu_custom_call.1']
    #allocation5 [shape = 'u8[401408]{0}', space=vmem, size = 0x62000, scoped, tag = 'input window, operand 1, single buffered']
    #allocation6 [shape = 's32[1]{0}', space=sflag, size = 0x4, scoped, tag = 'scoped memory for tpu_custom_call.1']
    #allocation7 [shape = 'u8[1024]{0}', space=vmem, size = 0x400, scoped, tag = 'input window, operand 2, single buffered']
    #allocation8 [shape = 'u8[65536]{0}', space=vmem, size = 0x10000, scoped, tag = 'input window, operand 3, single buffered']
    #allocation9 [shape = 's32[1]{0}', space=sflag, size = 0x4, scoped, tag = 'scoped memory for tpu_custom_call.1']
    #allocation10 [shape = 'u8[32768]{0}', space=vmem, size = 0x8000, scoped, tag = 'input window, operand 5, single buffered']
    #allocation11 [shape = 'u8[2048]{0}', space=vmem, size = 0x800, scoped, tag = 'output window, operand 0, single buffered']
    %12 = vsyncpa [#allocation3], 0
    %13 = vsyncpa [#allocation6], 0
    %14 = vsyncpa [#allocation9], 0
    %15 = vsyncpa [#allocation4], 0
    // Predicated region
    $region2: #{tpu_custom_call.1} parent=1 // pred_check
      _
    $region3: #{tpu_custom_call.1} parent=1 // pred_check_branch
      %17 = sbr.rel (0) target = $region5
    $region4: #{tpu_custom_call.1} parent=1 // pred_region
      %19 = vsyncadd [#allocation3], 672
      %s20 = sshll.u32 %s0, 4
      %s21 = int_to_ptr.hbm [resolvable:$true] %s20
      %s22 = sshll.u32 [#allocation2], 4
      %s23 = int_to_ptr.vmem [resolvable:$true] %s22
      %28 = dma.hbm_to_vmem [thread:$0]  %s21, 224, %s23, [#allocation3], 224, 224, 14
    $region5: #{tpu_custom_call.1} parent=1 // pred_fallthru
      _
    // Predicated region
    $region6: #{tpu_custom_call.1} parent=1 // pred_check
      _
    $region7: #{tpu_custom_call.1} parent=1 // pred_check_branch
      %30 = sbr.rel (0) target = $region9
    $region8: #{tpu_custom_call.1} parent=1 // pred_region
      %32 = vsyncadd [#allocation6], 0
      %s33 = sshll.u32 %s1, 4
      %s34 = int_to_ptr.hbm [resolvable:$true] %s33
      %s35 = sshll.u32 [#allocation5], 4
      %s36 = int_to_ptr.vmem [resolvable:$true] %s35
      %41 = dma.hbm_to_vmem [thread:$0]  %s34, 12544, %s36, [#allocation6], 128, 128, 8
    $region9: #{tpu_custom_call.1} parent=1 // pred_fallthru
      _
    // Predicated region
    $region10: #{tpu_custom_call.1} parent=1 // pred_check
      _
    $region11: #{tpu_custom_call.1} parent=1 // pred_check_branch
      %43 = sbr.rel (0) target = $region13
    $region12: #{tpu_custom_call.1} parent=1 // pred_region
      %45 = vsyncadd [#allocation6], 0
      %s47 = sshll.u32 %s2, 4
      %s48 = int_to_ptr.hbm [resolvable:$true] %s47
      %s49 = sshll.u32 [#allocation7], 4
      %s50 = int_to_ptr.vmem [resolvable:$true] %s49
      %52 = dma.hbm_to_vmem [thread:$0]  %s48, 32, %s50, [#allocation6]
    $region13: #{tpu_custom_call.1} parent=1 // pred_fallthru
      _
    // Predicated region
    $region14: #{tpu_custom_call.1} parent=1 // pred_check
      _
    $region15: #{tpu_custom_call.1} parent=1 // pred_check_branch
      %54 = sbr.rel (0) target = $region17
    $region16: #{tpu_custom_call.1} parent=1 // pred_region
      %56 = vsyncadd [#allocation9], 0
      %s57 = sshll.u32 %s3, 4
      %s58 = int_to_ptr.hbm [resolvable:$true] %s57
      %s59 = sshll.u32 [#allocation8], 4
      %s60 = int_to_ptr.vmem [resolvable:$true] %s59
      %65 = dma.hbm_to_vmem [thread:$0]  %s58, 2048, %s60, [#allocation9], 64, 64, 4
    $region17: #{tpu_custom_call.1} parent=1 // pred_fallthru
      _
    // Predicated region
    $region18: #{tpu_custom_call.1} parent=1 // pred_check
      _
    $region19: #{tpu_custom_call.1} parent=1 // pred_check_branch
      %67 = sbr.rel (0) target = $region21
    $region20: #{tpu_custom_call.1} parent=1 // pred_region
      _
    $region21: #{tpu_custom_call.1} parent=1 // pred_fallthru
      _
    // Predicated region
    $region22: #{tpu_custom_call.1} parent=1 // pred_check
      _
    $region23: #{tpu_custom_call.1} parent=1 // pred_check_branch
      %69 = sbr.rel (0) target = $region25
    $region24: #{tpu_custom_call.1} parent=1 // pred_region
      %71 = vsyncadd [#allocation9], 0
      %s72 = sshll.u32 %s5, 4
      %s73 = int_to_ptr.hbm [resolvable:$true] %s72
      %s74 = sshll.u32 [#allocation10], 4
      %s75 = int_to_ptr.vmem [resolvable:$true] %s74
      %80 = dma.hbm_to_vmem [thread:$0]  %s73, 1024, %s75, [#allocation9], 64, 64, 4
    $region25: #{tpu_custom_call.1} parent=1 // pred_fallthru
      _
    // Predicated region
    $region26: #{tpu_custom_call.1} parent=1 // pred_check
      _
    $region27: #{tpu_custom_call.1} parent=1 // pred_check_branch
      %82 = sbr.rel (0) target = $region29
    $region28: #{tpu_custom_call.1} parent=1 // pred_region
      _
    $region29: #{tpu_custom_call.1} parent=1 // pred_fallthru
      _
    // Predicated region
    $region30: #{tpu_custom_call.1} parent=1 // pred_check
      _
    $region31: #{tpu_custom_call.1} parent=1 // pred_check_branch
      %84 = sbr.rel (0) target = $region33
    $region32: #{tpu_custom_call.1} parent=1 // pred_region
      %86 = dma.done [#allocation3], 896
    $region33: #{tpu_custom_call.1} parent=1 // pred_fallthru
      _
    // Predicated region
    $region34: #{tpu_custom_call.1} parent=1 // pred_check
      _
    $region35: #{tpu_custom_call.1} parent=1 // pred_check_branch
      %88 = sbr.rel (0) target = $region37
    $region36: #{tpu_custom_call.1} parent=1 // pred_region
      %90 = dma.done [#allocation6], 12544
    $region37: #{tpu_custom_call.1} parent=1 // pred_fallthru
      _
    // Predicated region
    $region38: #{tpu_custom_call.1} parent=1 // pred_check
      _
    $region39: #{tpu_custom_call.1} parent=1 // pred_check_branch
      %92 = sbr.rel (0) target = $region41
    $region40: #{tpu_custom_call.1} parent=1 // pred_region
      %94 = dma.done [#allocation6], 32
    $region41: #{tpu_custom_call.1} parent=1 // pred_fallthru
      _
    // Predicated region
    $region42: #{tpu_custom_call.1} parent=1 // pred_check
      _
    $region43: #{tpu_custom_call.1} parent=1 // pred_check_branch
      %96 = sbr.rel (0) target = $region45
    $region44: #{tpu_custom_call.1} parent=1 // pred_region
      %98 = dma.done [#allocation9], 2048
    $region45: #{tpu_custom_call.1} parent=1 // pred_fallthru
      _
    // Predicated region
    $region46: #{tpu_custom_call.1} parent=1 // pred_check
      _
    $region47: #{tpu_custom_call.1} parent=1 // pred_check_branch
      %100 = sbr.rel (0) target = $region49
    $region48: #{tpu_custom_call.1} parent=1 // pred_region
      %102 = dma.done [#allocation9], 1024
    $region49: #{tpu_custom_call.1} parent=1 // pred_fallthru
      _
    %v104 = vld [vmem:[#allocation2] sm:$0xff]
    %v105 = vld [vmem:[#allocation2 + $0x8] sm:$0x3f]
    %v106 = vld [vmem:[#allocation2 + $0xe] sm:$0xff]
    %v107 = vld [vmem:[#allocation2 + $0x16] sm:$0x3f]
    %v108 = vld [vmem:[#allocation2 + $0x1c] sm:$0xff]
    %v109 = vld [vmem:[#allocation2 + $0x24] sm:$0x3f]
    %v110 = vld [vmem:[#allocation2 + $0x2a] sm:$0xff]
    %v111 = vld [vmem:[#allocation2 + $0x32] sm:$0x3f]
    %120 = vst [vmem:[#allocation1] ss:$4 sm:$0xff] %v104
    %s121 = scalar_lea.vmem [#allocation1], 1
    %122 = vst [vmem:[%s121] ss:$4 sm:$0xff] %v106
    %s123 = scalar_lea.vmem [#allocation1], 2
    %124 = vst [vmem:[%s123] ss:$4 sm:$0xff] %v108
    %s125 = scalar_lea.vmem [#allocation1], 3
    %126 = vst [vmem:[%s125] ss:$4 sm:$0xff] %v110
    %s127 = scalar_lea.vmem [#allocation1], 32
    %128 = vst [vmem:[%s127] ss:$4 sm:$0xff] %v105
    %s129 = scalar_lea.vmem [#allocation1], 33
    %130 = vst [vmem:[%s129] ss:$4 sm:$0xff] %v107
    %s131 = scalar_lea.vmem [#allocation1], 34
    %132 = vst [vmem:[%s131] ss:$4 sm:$0xff] %v109
    %s133 = scalar_lea.vmem [#allocation1], 35
    %134 = vst [vmem:[%s133] ss:$4 sm:$0xff] %v111
    %v135 = vld.sshfl [vmem:[#allocation1] sm:$0xff pattern:$0x73625140]
    %v136 = vld.sshfl [vmem:[#allocation1 + $0x8] sm:$0xff pattern:$0x73625140]
    %v137 = vld.sshfl [vmem:[#allocation1 + $0x10] sm:$0xff pattern:$0x73625140]
    %v138 = vld.sshfl [vmem:[#allocation1 + $0x18] sm:$0xff pattern:$0x73625140]
    %v139 = vld.sshfl [vmem:[#allocation1 + $0x20] sm:$0xff pattern:$0x73625140]
    %v140 = vld.sshfl [vmem:[#allocation1 + $0x28] sm:$0xff pattern:$0x73625140]
    %v141 = vld.sshfl [vmem:[#allocation1 + $0x30] sm:$0xff pattern:$0x73625140]
    %v149 = vpack.c.bf16 %v135, %v135
    %v150 = vpack.c.bf16 %v136, %v136
    %v151 = vpack.c.bf16 %v137, %v137
    %v152 = vpack.c.bf16 %v138, %v138
    %v153 = vpack.c.bf16 %v139, %v139
    %v154 = vpack.c.bf16 %v140, %v140
    %v155 = vpack.c.bf16 %v141, %v141
    %v156 = vld [vmem:[#allocation5] sm:$0xff]
    %v157 = vld [vmem:[#allocation5 + $0x8] sm:$0xff]
    %v158 = vld [vmem:[#allocation5 + $0x10] sm:$0xff]
    %v159 = vld [vmem:[#allocation5 + $0x18] sm:$0xff]
    %v160 = vld [vmem:[#allocation5 + $0x20] sm:$0xff]
    %v161 = vld [vmem:[#allocation5 + $0x28] sm:$0xff]
    %v162 = vld [vmem:[#allocation5 + $0x30] sm:$0xff]
    %v163 = vld [vmem:[#allocation5 + $0x38] sm:$0xff]
    %v164 = vld [vmem:[#allocation5 + $0x40] sm:$0xff]
    %v165 = vld [vmem:[#allocation5 + $0x48] sm:$0xff]
    %v166 = vld [vmem:[#allocation5 + $0x50] sm:$0xff]
    %v167 = vld [vmem:[#allocation5 + $0x58] sm:$0xff]
    %v168 = vld [vmem:[#allocation5 + $0x60] sm:$0xff]
    %v169 = vld [vmem:[#allocation5 + $0x68] sm:$0xff]
    %v170 = vld [vmem:[#allocation5 + $0x70] sm:$0xff]
    %v171 = vld [vmem:[#allocation5 + $0x78] sm:$0xff]
    %v172 = vld [vmem:[#allocation5 + $0x80] sm:$0xff]
    %v173 = vld [vmem:[#allocation5 + $0x88] sm:$0xff]
    %v174 = vld [vmem:[#allocation5 + $0x90] sm:$0xff]
    %v175 = vld [vmem:[#allocation5 + $0x98] sm:$0xff]
    %v176 = vld [vmem:[#allocation5 + $0xa0] sm:$0xff]
    %v177 = vld [vmem:[#allocation5 + $0xa8] sm:$0xff]
    %v178 = vld [vmem:[#allocation5 + $0xb0] sm:$0xff]
    %v179 = vld [vmem:[#allocation5 + $0xb8] sm:$0xff]
    %v180 = vld [vmem:[#allocation5 + $0xc0] sm:$0xff]
    %v181 = vld [vmem:[#allocation5 + $0xc8] sm:$0xff]
    %v182 = vld [vmem:[#allocation5 + $0xd0] sm:$0xff]
    %v183 = vld [vmem:[#allocation5 + $0xd8] sm:$0xff]
    %v184 = vld [vmem:[#allocation5 + $0xe0] sm:$0xff]
    %v185 = vld [vmem:[#allocation5 + $0xe8] sm:$0xff]
    %v186 = vld [vmem:[#allocation5 + $0xf0] sm:$0xff]
    %v187 = vld [vmem:[#allocation5 + $0xf8] sm:$0xff]
    %v188 = vld [vmem:[#allocation5 + $0x100] sm:$0xff]
    %v189 = vld [vmem:[#allocation5 + $0x108] sm:$0xff]
    %v190 = vld [vmem:[#allocation5 + $0x110] sm:$0xff]
    %v191 = vld [vmem:[#allocation5 + $0x118] sm:$0xff]
    %v192 = vld [vmem:[#allocation5 + $0x120] sm:$0xff]
    %v193 = vld [vmem:[#allocation5 + $0x128] sm:$0xff]
    %v194 = vld [vmem:[#allocation5 + $0x130] sm:$0xff]
    %v195 = vld [vmem:[#allocation5 + $0x138] sm:$0xff]
    %v196 = vld [vmem:[#allocation5 + $0x140] sm:$0xff]
    %v197 = vld [vmem:[#allocation5 + $0x148] sm:$0xff]
    %v198 = vld [vmem:[#allocation5 + $0x150] sm:$0xff]
    %v199 = vld [vmem:[#allocation5 + $0x158] sm:$0xff]
    %v200 = vld [vmem:[#allocation5 + $0x160] sm:$0xff]
    %v201 = vld [vmem:[#allocation5 + $0x168] sm:$0xff]
    %v202 = vld [vmem:[#allocation5 + $0x170] sm:$0xff]
    %v203 = vld [vmem:[#allocation5 + $0x178] sm:$0xff]
    %v204 = vld [vmem:[#allocation5 + $0x180] sm:$0xff]
    %v205 = vld [vmem:[#allocation5 + $0x188] sm:$0xff]
    %v206 = vld [vmem:[#allocation5 + $0x190] sm:$0xff]
    %v207 = vld [vmem:[#allocation5 + $0x198] sm:$0xff]
    %v208 = vld [vmem:[#allocation5 + $0x1a0] sm:$0xff]
    %v209 = vld [vmem:[#allocation5 + $0x1a8] sm:$0xff]
    %v210 = vld [vmem:[#allocation5 + $0x1b0] sm:$0xff]
    %v211 = vld [vmem:[#allocation5 + $0x1b8] sm:$0xff]
    %v212 = vld [vmem:[#allocation5 + $0x1c0] sm:$0xff]
    %v213 = vld [vmem:[#allocation5 + $0x1c8] sm:$0xff]
    %v214 = vld [vmem:[#allocation5 + $0x1d0] sm:$0xff]
    %v215 = vld [vmem:[#allocation5 + $0x1d8] sm:$0xff]
    %v216 = vld [vmem:[#allocation5 + $0x1e0] sm:$0xff]
    %v217 = vld [vmem:[#allocation5 + $0x1e8] sm:$0xff]
    %v218 = vld [vmem:[#allocation5 + $0x1f0] sm:$0xff]
    %v219 = vld [vmem:[#allocation5 + $0x1f8] sm:$0xff]
    %v220 = vld [vmem:[#allocation5 + $0x200] sm:$0xff]
    %v221 = vld [vmem:[#allocation5 + $0x208] sm:$0xff]
    %v222 = vld [vmem:[#allocation5 + $0x210] sm:$0xff]
    %v223 = vld [vmem:[#allocation5 + $0x218] sm:$0xff]
    %v224 = vld [vmem:[#allocation5 + $0x220] sm:$0xff]
    %v225 = vld [vmem:[#allocation5 + $0x228] sm:$0xff]
    %v226 = vld [vmem:[#allocation5 + $0x230] sm:$0xff]
    %v227 = vld [vmem:[#allocation5 + $0x238] sm:$0xff]
    %v228 = vld [vmem:[#allocation5 + $0x240] sm:$0xff]
    %v229 = vld [vmem:[#allocation5 + $0x248] sm:$0xff]
    %v230 = vld [vmem:[#allocation5 + $0x250] sm:$0xff]
    %v231 = vld [vmem:[#allocation5 + $0x258] sm:$0xff]
    %v232 = vld [vmem:[#allocation5 + $0x260] sm:$0xff]
    %v233 = vld [vmem:[#allocation5 + $0x268] sm:$0xff]
    %v234 = vld [vmem:[#allocation5 + $0x270] sm:$0xff]
    %v235 = vld [vmem:[#allocation5 + $0x278] sm:$0xff]
    %v236 = vld [vmem:[#allocation5 + $0x280] sm:$0xff]
    %v237 = vld [vmem:[#allocation5 + $0x288] sm:$0xff]
    %v238 = vld [vmem:[#allocation5 + $0x290] sm:$0xff]
    %v239 = vld [vmem:[#allocation5 + $0x298] sm:$0xff]
    %v240 = vld [vmem:[#allocation5 + $0x2a0] sm:$0xff]
    %v241 = vld [vmem:[#allocation5 + $0x2a8] sm:$0xff]
    %v242 = vld [vmem:[#allocation5 + $0x2b0] sm:$0xff]
    %v243 = vld [vmem:[#allocation5 + $0x2b8] sm:$0xff]
    %v244 = vld [vmem:[#allocation5 + $0x2c0] sm:$0xff]
    %v245 = vld [vmem:[#allocation5 + $0x2c8] sm:$0xff]
    %v246 = vld [vmem:[#allocation5 + $0x2d0] sm:$0xff]
    %v247 = vld [vmem:[#allocation5 + $0x2d8] sm:$0xff]
    %v248 = vld [vmem:[#allocation5 + $0x2e0] sm:$0xff]
    %v249 = vld [vmem:[#allocation5 + $0x2e8] sm:$0xff]
    %v250 = vld [vmem:[#allocation5 + $0x2f0] sm:$0xff]
    %v251 = vld [vmem:[#allocation5 + $0x2f8] sm:$0xff]
    %v252 = vld [vmem:[#allocation5 + $0x300] sm:$0xff]
    %v253 = vld [vmem:[#allocation5 + $0x308] sm:$0xff]
    %v254 = vld [vmem:[#allocation7] sm:$0x3]
    %v256 = vperm.slane %v254, 0
    %v257 = vperm.slane %v254, 1
    %v358 = vunpack.c.l.b16 %v156
    %v359 = vunpack.c.h.b16 %v156
    %v360 = vunpack.c.l.b16 %v157
    %v361 = vunpack.c.h.b16 %v157
    %v362 = vunpack.c.l.b16 %v158
    %v363 = vunpack.c.h.b16 %v158
    %v364 = vunpack.c.l.b16 %v159
    %v365 = vunpack.c.h.b16 %v159
    %v366 = vunpack.c.l.b16 %v160
    %v367 = vunpack.c.h.b16 %v160
    %v368 = vunpack.c.l.b16 %v161
    %v369 = vunpack.c.h.b16 %v161
    %v370 = vunpack.c.l.b16 %v162
    %v371 = vunpack.c.h.b16 %v162
    %v372 = vunpack.c.l.b16 %v163
    %v373 = vunpack.c.h.b16 %v163
    %v374 = vunpack.c.l.b16 %v164
    %v375 = vunpack.c.h.b16 %v164
    %v376 = vunpack.c.l.b16 %v165
    %v377 = vunpack.c.h.b16 %v165
    %v378 = vunpack.c.l.b16 %v166
    %v379 = vunpack.c.h.b16 %v166
    %v380 = vunpack.c.l.b16 %v167
    %v381 = vunpack.c.h.b16 %v167
    %v382 = vunpack.c.l.b16 %v168
    %v383 = vunpack.c.h.b16 %v168
    %v384 = vunpack.c.l.b16 %v169
    %v385 = vunpack.c.h.b16 %v169
    %v386 = vunpack.c.l.b16 %v170
    %v387 = vunpack.c.h.b16 %v170
    %v388 = vunpack.c.l.b16 %v171
    %v389 = vunpack.c.h.b16 %v171
    %v390 = vunpack.c.l.b16 %v172
    %v391 = vunpack.c.h.b16 %v172
    %v392 = vunpack.c.l.b16 %v173
    %v393 = vunpack.c.h.b16 %v173
    %v394 = vunpack.c.l.b16 %v174
    %v395 = vunpack.c.h.b16 %v174
    %v396 = vunpack.c.l.b16 %v175
    %v397 = vunpack.c.h.b16 %v175
    %v398 = vunpack.c.l.b16 %v176
    %v399 = vunpack.c.h.b16 %v176
    %v400 = vunpack.c.l.b16 %v177
    %v401 = vunpack.c.h.b16 %v177
    %v402 = vunpack.c.l.b16 %v178
    %v403 = vunpack.c.h.b16 %v178
    %v404 = vunpack.c.l.b16 %v179
    %v405 = vunpack.c.h.b16 %v179
    %v406 = vunpack.c.l.b16 %v180
    %v407 = vunpack.c.h.b16 %v180
    %v408 = vunpack.c.l.b16 %v181
    %v409 = vunpack.c.h.b16 %v181
    %v410 = vunpack.c.l.b16 %v182
    %v411 = vunpack.c.h.b16 %v182
    %v412 = vunpack.c.l.b16 %v183
    %v413 = vunpack.c.h.b16 %v183
    %v414 = vunpack.c.l.b16 %v184
    %v415 = vunpack.c.h.b16 %v184
    %v416 = vunpack.c.l.b16 %v185
    %v417 = vunpack.c.h.b16 %v185
    %v418 = vunpack.c.l.b16 %v186
    %v419 = vunpack.c.h.b16 %v186
    %v420 = vunpack.c.l.b16 %v187
    %v421 = vunpack.c.h.b16 %v187
    %v422 = vunpack.c.l.b16 %v188
    %v423 = vunpack.c.h.b16 %v188
    %v424 = vunpack.c.l.b16 %v189
    %v425 = vunpack.c.h.b16 %v189
    %v426 = vunpack.c.l.b16 %v190
    %v427 = vunpack.c.h.b16 %v190
    %v428 = vunpack.c.l.b16 %v191
    %v429 = vunpack.c.h.b16 %v191
    %v430 = vunpack.c.l.b16 %v192
    %v431 = vunpack.c.h.b16 %v192
    %v432 = vunpack.c.l.b16 %v193
    %v433 = vunpack.c.h.b16 %v193
    %v434 = vunpack.c.l.b16 %v194
    %v435 = vunpack.c.h.b16 %v194
    %v436 = vunpack.c.l.b16 %v195
    %v437 = vunpack.c.h.b16 %v195
    %v438 = vunpack.c.l.b16 %v196
    %v439 = vunpack.c.h.b16 %v196
    %v440 = vunpack.c.l.b16 %v197
    %v441 = vunpack.c.h.b16 %v197
    %v442 = vunpack.c.l.b16 %v198
    %v443 = vunpack.c.h.b16 %v198
    %v444 = vunpack.c.l.b16 %v199
    %v445 = vunpack.c.h.b16 %v199
    %v446 = vunpack.c.l.b16 %v200
    %v447 = vunpack.c.h.b16 %v200
    %v448 = vunpack.c.l.b16 %v201
    %v449 = vunpack.c.h.b16 %v201
    %v450 = vunpack.c.l.b16 %v202
    %v451 = vunpack.c.h.b16 %v202
    %v452 = vunpack.c.l.b16 %v203
    %v453 = vunpack.c.h.b16 %v203
    %v454 = vunpack.c.l.b16 %v204
    %v455 = vunpack.c.h.b16 %v204
    %v456 = vunpack.c.l.b16 %v205
    %v457 = vunpack.c.h.b16 %v205
    %v458 = vunpack.c.l.b16 %v206
    %v459 = vunpack.c.h.b16 %v206
    %v460 = vunpack.c.l.b16 %v207
    %v461 = vunpack.c.h.b16 %v207
    %v462 = vunpack.c.l.b16 %v208
    %v463 = vunpack.c.h.b16 %v208
    %v464 = vunpack.c.l.b16 %v209
    %v465 = vunpack.c.h.b16 %v209
    %v466 = vunpack.c.l.b16 %v210
    %v467 = vunpack.c.h.b16 %v210
    %v468 = vunpack.c.l.b16 %v211
    %v469 = vunpack.c.h.b16 %v211
    %v470 = vunpack.c.l.b16 %v212
    %v471 = vunpack.c.h.b16 %v212
    %v472 = vunpack.c.l.b16 %v213
    %v473 = vunpack.c.h.b16 %v213
    %v474 = vunpack.c.l.b16 %v214
    %v475 = vunpack.c.h.b16 %v214
    %v476 = vunpack.c.l.b16 %v215
    %v477 = vunpack.c.h.b16 %v215
    %v478 = vunpack.c.l.b16 %v216
    %v479 = vunpack.c.h.b16 %v216
    %v480 = vunpack.c.l.b16 %v217
    %v481 = vunpack.c.h.b16 %v217
    %v482 = vunpack.c.l.b16 %v218
    %v483 = vunpack.c.h.b16 %v218
    %v484 = vunpack.c.l.b16 %v219
    %v485 = vunpack.c.h.b16 %v219
    %v486 = vunpack.c.l.b16 %v220
    %v487 = vunpack.c.h.b16 %v220
    %v488 = vunpack.c.l.b16 %v221
    %v489 = vunpack.c.h.b16 %v221
    %v490 = vunpack.c.l.b16 %v222
    %v491 = vunpack.c.h.b16 %v222
    %v492 = vunpack.c.l.b16 %v223
    %v493 = vunpack.c.h.b16 %v223
    %v494 = vunpack.c.l.b16 %v224
    %v495 = vunpack.c.h.b16 %v224
    %v496 = vunpack.c.l.b16 %v225
    %v497 = vunpack.c.h.b16 %v225
    %v498 = vunpack.c.l.b16 %v226
    %v499 = vunpack.c.h.b16 %v226
    %v500 = vunpack.c.l.b16 %v227
    %v501 = vunpack.c.h.b16 %v227
    %v502 = vunpack.c.l.b16 %v228
    %v503 = vunpack.c.h.b16 %v228
    %v504 = vunpack.c.l.b16 %v229
    %v505 = vunpack.c.h.b16 %v229
    %v506 = vunpack.c.l.b16 %v230
    %v507 = vunpack.c.h.b16 %v230
    %v508 = vunpack.c.l.b16 %v231
    %v509 = vunpack.c.h.b16 %v231
    %v510 = vunpack.c.l.b16 %v232
    %v511 = vunpack.c.h.b16 %v232
    %v512 = vunpack.c.l.b16 %v233
    %v513 = vunpack.c.h.b16 %v233
    %v514 = vunpack.c.l.b16 %v234
    %v515 = vunpack.c.h.b16 %v234
    %v516 = vunpack.c.l.b16 %v235
    %v517 = vunpack.c.h.b16 %v235
    %v518 = vunpack.c.l.b16 %v236
    %v519 = vunpack.c.h.b16 %v236
    %v520 = vunpack.c.l.b16 %v237
    %v521 = vunpack.c.h.b16 %v237
    %v522 = vunpack.c.l.b16 %v238
    %v523 = vunpack.c.h.b16 %v238
    %v524 = vunpack.c.l.b16 %v239
    %v525 = vunpack.c.h.b16 %v239
    %v526 = vunpack.c.l.b16 %v240
    %v527 = vunpack.c.h.b16 %v240
    %v528 = vunpack.c.l.b16 %v241
    %v529 = vunpack.c.h.b16 %v241
    %v530 = vunpack.c.l.b16 %v242
    %v531 = vunpack.c.h.b16 %v242
    %v532 = vunpack.c.l.b16 %v243
    %v533 = vunpack.c.h.b16 %v243
    %v534 = vunpack.c.l.b16 %v244
    %v535 = vunpack.c.h.b16 %v244
    %v536 = vunpack.c.l.b16 %v245
    %v537 = vunpack.c.h.b16 %v245
    %v538 = vunpack.c.l.b16 %v246
    %v539 = vunpack.c.h.b16 %v246
    %v540 = vunpack.c.l.b16 %v247
    %v541 = vunpack.c.h.b16 %v247
    %v542 = vunpack.c.l.b16 %v248
    %v543 = vunpack.c.h.b16 %v248
    %v544 = vunpack.c.l.b16 %v249
    %v545 = vunpack.c.h.b16 %v249
    %v546 = vunpack.c.l.b16 %v250
    %v547 = vunpack.c.h.b16 %v250
    %v548 = vunpack.c.l.b16 %v251
    %v549 = vunpack.c.h.b16 %v251
    %v550 = vunpack.c.l.b16 %v252
    %v551 = vunpack.c.h.b16 %v252
    %v552 = vunpack.c.l.b16 %v253
    %v553 = vunpack.c.h.b16 %v253
    %v554 = vpack.c.b16 %v360, %v358
    %v555 = vpack.c.b16 %v361, %v359
    %v556 = vpack.c.b16 %v364, %v362
    %v557 = vpack.c.b16 %v365, %v363
    %v558 = vpack.c.b16 %v368, %v366
    %v559 = vpack.c.b16 %v369, %v367
    %v560 = vpack.c.b16 %v372, %v370
    %v561 = vpack.c.b16 %v373, %v371
    %v562 = vpack.c.b16 %v376, %v374
    %v563 = vpack.c.b16 %v377, %v375
    %v564 = vpack.c.b16 %v380, %v378
    %v565 = vpack.c.b16 %v381, %v379
    %v566 = vpack.c.b16 %v384, %v382
    %v567 = vpack.c.b16 %v385, %v383
    %v568 = vpack.c.b16 %v388, %v386
    %v569 = vpack.c.b16 %v389, %v387
    %v570 = vpack.c.b16 %v392, %v390
    %v571 = vpack.c.b16 %v393, %v391
    %v572 = vpack.c.b16 %v396, %v394
    %v573 = vpack.c.b16 %v397, %v395
    %v574 = vpack.c.b16 %v400, %v398
    %v575 = vpack.c.b16 %v401, %v399
    %v576 = vpack.c.b16 %v404, %v402
    %v577 = vpack.c.b16 %v405, %v403
    %v578 = vpack.c.b16 %v408, %v406
    %v579 = vpack.c.b16 %v409, %v407
    %v580 = vpack.c.b16 %v412, %v410
    %v581 = vpack.c.b16 %v413, %v411
    %v582 = vpack.c.b16 %v416, %v414
    %v583 = vpack.c.b16 %v417, %v415
    %v584 = vpack.c.b16 %v420, %v418
    %v585 = vpack.c.b16 %v421, %v419
    %v586 = vpack.c.b16 %v424, %v422
    %v587 = vpack.c.b16 %v425, %v423
    %v588 = vpack.c.b16 %v428, %v426
    %v589 = vpack.c.b16 %v429, %v427
    %v590 = vpack.c.b16 %v432, %v430
    %v591 = vpack.c.b16 %v433, %v431
    %v592 = vpack.c.b16 %v436, %v434
    %v593 = vpack.c.b16 %v437, %v435
    %v594 = vpack.c.b16 %v440, %v438
    %v595 = vpack.c.b16 %v441, %v439
    %v596 = vpack.c.b16 %v444, %v442
    %v597 = vpack.c.b16 %v445, %v443
    %v598 = vpack.c.b16 %v448, %v446
    %v599 = vpack.c.b16 %v449, %v447
    %v600 = vpack.c.b16 %v452, %v450
    %v601 = vpack.c.b16 %v453, %v451
    %v602 = vpack.c.b16 %v456, %v454
    %v603 = vpack.c.b16 %v457, %v455
    %v604 = vpack.c.b16 %v460, %v458
    %v605 = vpack.c.b16 %v461, %v459
    %v606 = vpack.c.b16 %v464, %v462
    %v607 = vpack.c.b16 %v465, %v463
    %v608 = vpack.c.b16 %v468, %v466
    %v609 = vpack.c.b16 %v469, %v467
    %v610 = vpack.c.b16 %v472, %v470
    %v611 = vpack.c.b16 %v473, %v471
    %v612 = vpack.c.b16 %v476, %v474
    %v613 = vpack.c.b16 %v477, %v475
    %v614 = vpack.c.b16 %v480, %v478
    %v615 = vpack.c.b16 %v481, %v479
    %v616 = vpack.c.b16 %v484, %v482
    %v617 = vpack.c.b16 %v485, %v483
    %v618 = vpack.c.b16 %v488, %v486
    %v619 = vpack.c.b16 %v489, %v487
    %v620 = vpack.c.b16 %v492, %v490
    %v621 = vpack.c.b16 %v493, %v491
    %v622 = vpack.c.b16 %v496, %v494
    %v623 = vpack.c.b16 %v497, %v495
    %v624 = vpack.c.b16 %v500, %v498
    %v625 = vpack.c.b16 %v501, %v499
    %v626 = vpack.c.b16 %v504, %v502
    %v627 = vpack.c.b16 %v505, %v503
    %v628 = vpack.c.b16 %v508, %v506
    %v629 = vpack.c.b16 %v509, %v507
    %v630 = vpack.c.b16 %v512, %v510
    %v631 = vpack.c.b16 %v513, %v511
    %v632 = vpack.c.b16 %v516, %v514
    %v633 = vpack.c.b16 %v517, %v515
    %v634 = vpack.c.b16 %v520, %v518
    %v635 = vpack.c.b16 %v521, %v519
    %v636 = vpack.c.b16 %v524, %v522
    %v637 = vpack.c.b16 %v525, %v523
    %v638 = vpack.c.b16 %v528, %v526
    %v639 = vpack.c.b16 %v529, %v527
    %v640 = vpack.c.b16 %v532, %v530
    %v641 = vpack.c.b16 %v533, %v531
    %v642 = vpack.c.b16 %v536, %v534
    %v643 = vpack.c.b16 %v537, %v535
    %v644 = vpack.c.b16 %v540, %v538
    %v645 = vpack.c.b16 %v541, %v539
    %v646 = vpack.c.b16 %v544, %v542
    %v647 = vpack.c.b16 %v545, %v543
    %v648 = vpack.c.b16 %v548, %v546
    %v649 = vpack.c.b16 %v549, %v547
    %v650 = vpack.c.b16 %v552, %v550
    %v651 = vpack.c.b16 %v553, %v551
    %vm750 = vcmask 130048
    %v752 = vsel %vm750, %v155, 0
    %754 = vmatpush.bf16.msra.mxu0 %v568
    %755 = vmatpush.bf16.msra.mxu0 %v566
    %756 = vmatpush.bf16.msra.mxu0 %v564
    %757 = vmatpush.bf16.msra.mxu0 %v562
    %758 = vmatpush.bf16.msra.mxu0 %v560
    %759 = vmatpush.bf16.msra.mxu0 %v558
    %760 = vmatpush.bf16.msra.mxu0 %v556
    %761 = vmatpush.bf16.msra.mxu0 %v554
    %762 = vmatmul.bf16.gmra.mxu0 %v149
    %v763 = vpop.f32.mrf.mxu0
    %v764 = vadd.f32 %v256, %v763
    %v765 = vpop.f32.mrf.mxu0
    %766 = vdwg.mxu0
    %767 = vmatpush.bf16.msra.mxu0 %v584
    %768 = vmatpush.bf16.msra.mxu0 %v582
    %769 = vmatpush.bf16.msra.mxu0 %v580
    %770 = vmatpush.bf16.msra.mxu0 %v578
    %771 = vmatpush.bf16.msra.mxu0 %v576
    %772 = vmatpush.bf16.msra.mxu0 %v574
    %773 = vmatpush.bf16.msra.mxu0 %v572
    %774 = vmatpush.bf16.msra.mxu0 %v570
    %775 = vmatmul.bf16.gmra.mxu0 %v150
    %v776 = vpop.f32.mrf.mxu0
    %v777 = vadd.f32 %v764, %v776
    %v778 = vpop.f32.mrf.mxu0
    %779 = vdwg.mxu0
    %780 = vmatpush.bf16.msra.mxu0 %v600
    %781 = vmatpush.bf16.msra.mxu0 %v598
    %782 = vmatpush.bf16.msra.mxu0 %v596
    %783 = vmatpush.bf16.msra.mxu0 %v594
    %784 = vmatpush.bf16.msra.mxu0 %v592
    %785 = vmatpush.bf16.msra.mxu0 %v590
    %786 = vmatpush.bf16.msra.mxu0 %v588
    %787 = vmatpush.bf16.msra.mxu0 %v586
    %788 = vmatmul.bf16.gmra.mxu0 %v151
    %v789 = vpop.f32.mrf.mxu0
    %v790 = vadd.f32 %v777, %v789
    %v791 = vpop.f32.mrf.mxu0
    %792 = vdwg.mxu0
    %793 = vmatpush.bf16.msra.mxu0 %v616
    %794 = vmatpush.bf16.msra.mxu0 %v614
    %795 = vmatpush.bf16.msra.mxu0 %v612
    %796 = vmatpush.bf16.msra.mxu0 %v610
    %797 = vmatpush.bf16.msra.mxu0 %v608
    %798 = vmatpush.bf16.msra.mxu0 %v606
    %799 = vmatpush.bf16.msra.mxu0 %v604
    %800 = vmatpush.bf16.msra.mxu0 %v602
    %801 = vmatmul.bf16.gmra.mxu0 %v152
    %v802 = vpop.f32.mrf.mxu0
    %v803 = vadd.f32 %v790, %v802
    %v804 = vpop.f32.mrf.mxu0
    %805 = vdwg.mxu0
    %806 = vmatpush.bf16.msra.mxu0 %v632
    %807 = vmatpush.bf16.msra.mxu0 %v630
    %808 = vmatpush.bf16.msra.mxu0 %v628
    %809 = vmatpush.bf16.msra.mxu0 %v626
    %810 = vmatpush.bf16.msra.mxu0 %v624
    %811 = vmatpush.bf16.msra.mxu0 %v622
    %812 = vmatpush.bf16.msra.mxu0 %v620
    %813 = vmatpush.bf16.msra.mxu0 %v618
    %814 = vmatmul.bf16.gmra.mxu0 %v153
    %v815 = vpop.f32.mrf.mxu0
    %v816 = vadd.f32 %v803, %v815
    %v817 = vpop.f32.mrf.mxu0
    %818 = vdwg.mxu0
    %819 = vmatpush.bf16.msra.mxu0 %v648
    %820 = vmatpush.bf16.msra.mxu0 %v646
    %821 = vmatpush.bf16.msra.mxu0 %v644
    %822 = vmatpush.bf16.msra.mxu0 %v642
    %823 = vmatpush.bf16.msra.mxu0 %v640
    %824 = vmatpush.bf16.msra.mxu0 %v638
    %825 = vmatpush.bf16.msra.mxu0 %v636
    %826 = vmatpush.bf16.msra.mxu0 %v634
    %827 = vmatmul.bf16.gmra.mxu0 %v154
    %v828 = vpop.f32.mrf.mxu0
    %v829 = vadd.f32 %v816, %v828
    %v830 = vpop.f32.mrf.mxu0
    %831 = vdwg.mxu0
    %832 = vmatpush.bf16.msra.mxu0 0
    %833 = vmatpush.bf16.msra.mxu0 0
    %834 = vmatpush.bf16.msra.mxu0 0
    %835 = vmatpush.bf16.msra.mxu0 0
    %836 = vmatpush.bf16.msra.mxu0 0
    %837 = vmatpush.bf16.msra.mxu0 0
    %838 = vmatpush.bf16.msra.mxu0 0
    %839 = vmatpush.bf16.msra.mxu0 %v650
    %840 = vmatmul.bf16.gmra.mxu0 %v752
    %v841 = vpop.f32.mrf.mxu0
    %v842 = vadd.f32 %v829, %v841
    %v843 = vpop.f32.mrf.mxu0
    %844 = vdwg.mxu0
    %845 = vmatpush.bf16.msra.mxu0 %v569
    %846 = vmatpush.bf16.msra.mxu0 %v567
    %847 = vmatpush.bf16.msra.mxu0 %v565
    %848 = vmatpush.bf16.msra.mxu0 %v563
    %849 = vmatpush.bf16.msra.mxu0 %v561
    %850 = vmatpush.bf16.msra.mxu0 %v559
    %851 = vmatpush.bf16.msra.mxu0 %v557
    %852 = vmatpush.bf16.msra.mxu0 %v555
    %853 = vmatmul.bf16.gmra.mxu0 %v149
    %v854 = vpop.f32.mrf.mxu0
    %v855 = vadd.f32 %v257, %v854
    %v856 = vpop.f32.mrf.mxu0
    %857 = vdwg.mxu0
    %858 = vmatpush.bf16.msra.mxu0 %v585
    %859 = vmatpush.bf16.msra.mxu0 %v583
    %860 = vmatpush.bf16.msra.mxu0 %v581
    %861 = vmatpush.bf16.msra.mxu0 %v579
    %862 = vmatpush.bf16.msra.mxu0 %v577
    %863 = vmatpush.bf16.msra.mxu0 %v575
    %864 = vmatpush.bf16.msra.mxu0 %v573
    %865 = vmatpush.bf16.msra.mxu0 %v571
    %866 = vmatmul.bf16.gmra.mxu0 %v150
    %v867 = vpop.f32.mrf.mxu0
    %v868 = vadd.f32 %v855, %v867
    %v869 = vpop.f32.mrf.mxu0
    %870 = vdwg.mxu0
    %871 = vmatpush.bf16.msra.mxu0 %v601
    %872 = vmatpush.bf16.msra.mxu0 %v599
    %873 = vmatpush.bf16.msra.mxu0 %v597
    %874 = vmatpush.bf16.msra.mxu0 %v595
    %875 = vmatpush.bf16.msra.mxu0 %v593
    %876 = vmatpush.bf16.msra.mxu0 %v591
    %877 = vmatpush.bf16.msra.mxu0 %v589
    %878 = vmatpush.bf16.msra.mxu0 %v587
    %879 = vmatmul.bf16.gmra.mxu0 %v151
    %v880 = vpop.f32.mrf.mxu0
    %v881 = vadd.f32 %v868, %v880
    %v882 = vpop.f32.mrf.mxu0
    %883 = vdwg.mxu0
    %884 = vmatpush.bf16.msra.mxu0 %v617
    %885 = vmatpush.bf16.msra.mxu0 %v615
    %886 = vmatpush.bf16.msra.mxu0 %v613
    %887 = vmatpush.bf16.msra.mxu0 %v611
    %888 = vmatpush.bf16.msra.mxu0 %v609
    %889 = vmatpush.bf16.msra.mxu0 %v607
    %890 = vmatpush.bf16.msra.mxu0 %v605
    %891 = vmatpush.bf16.msra.mxu0 %v603
    %892 = vmatmul.bf16.gmra.mxu0 %v152
    %v893 = vpop.f32.mrf.mxu0
    %v894 = vadd.f32 %v881, %v893
    %v895 = vpop.f32.mrf.mxu0
    %896 = vdwg.mxu0
    %897 = vmatpush.bf16.msra.mxu0 %v633
    %898 = vmatpush.bf16.msra.mxu0 %v631
    %899 = vmatpush.bf16.msra.mxu0 %v629
    %900 = vmatpush.bf16.msra.mxu0 %v627
    %901 = vmatpush.bf16.msra.mxu0 %v625
    %902 = vmatpush.bf16.msra.mxu0 %v623
    %903 = vmatpush.bf16.msra.mxu0 %v621
    %904 = vmatpush.bf16.msra.mxu0 %v619
    %905 = vmatmul.bf16.gmra.mxu0 %v153
    %v906 = vpop.f32.mrf.mxu0
    %v907 = vadd.f32 %v894, %v906
    %v908 = vpop.f32.mrf.mxu0
    %909 = vdwg.mxu0
    %910 = vmatpush.bf16.msra.mxu0 %v649
    %911 = vmatpush.bf16.msra.mxu0 %v647
    %912 = vmatpush.bf16.msra.mxu0 %v645
    %913 = vmatpush.bf16.msra.mxu0 %v643
    %914 = vmatpush.bf16.msra.mxu0 %v641
    %915 = vmatpush.bf16.msra.mxu0 %v639
    %916 = vmatpush.bf16.msra.mxu0 %v637
    %917 = vmatpush.bf16.msra.mxu0 %v635
    %918 = vmatmul.bf16.gmra.mxu0 %v154
    %v919 = vpop.f32.mrf.mxu0
    %v920 = vadd.f32 %v907, %v919
    %v921 = vpop.f32.mrf.mxu0
    %922 = vdwg.mxu0
    %923 = vmatpush.bf16.msra.mxu0 0
    %924 = vmatpush.bf16.msra.mxu0 0
    %925 = vmatpush.bf16.msra.mxu0 0
    %926 = vmatpush.bf16.msra.mxu0 0
    %927 = vmatpush.bf16.msra.mxu0 0
    %928 = vmatpush.bf16.msra.mxu0 0
    %929 = vmatpush.bf16.msra.mxu0 0
    %930 = vmatpush.bf16.msra.mxu0 %v651
    %931 = vmatmul.bf16.gmra.mxu0 %v752
    %v932 = vpop.f32.mrf.mxu0
    %v933 = vadd.f32 %v920, %v932
    %v934 = vpop.f32.mrf.mxu0
    %935 = vdwg.mxu0
    %v936 = vmax.f32 %v842, 0.0
    %v937 = vmax.f32 %v933, 0.0
    %v938 = vpack.c.bf16 %v936, %v936
    %v939 = vpack.c.bf16 %v937, %v937
    %v940 = vld [vmem:[#allocation8] sm:$0xf]
    %v941 = vld [vmem:[#allocation8 + $0x4] sm:$0xf]
    %v942 = vld [vmem:[#allocation8 + $0x8] sm:$0xf]
    %v943 = vld [vmem:[#allocation8 + $0xc] sm:$0xf]
    %v944 = vld [vmem:[#allocation8 + $0x10] sm:$0xf]
    %v945 = vld [vmem:[#allocation8 + $0x14] sm:$0xf]
    %v946 = vld [vmem:[#allocation8 + $0x18] sm:$0xf]
    %v947 = vld [vmem:[#allocation8 + $0x1c] sm:$0xf]
    %v948 = vld [vmem:[#allocation8 + $0x20] sm:$0xf]
    %v949 = vld [vmem:[#allocation8 + $0x24] sm:$0xf]
    %v950 = vld [vmem:[#allocation8 + $0x28] sm:$0xf]
    %v951 = vld [vmem:[#allocation8 + $0x2c] sm:$0xf]
    %v952 = vld [vmem:[#allocation8 + $0x30] sm:$0xf]
    %v953 = vld [vmem:[#allocation8 + $0x34] sm:$0xf]
    %v954 = vld [vmem:[#allocation8 + $0x38] sm:$0xf]
    %v955 = vld [vmem:[#allocation8 + $0x3c] sm:$0xf]
    %v956 = vld [vmem:[#allocation8 + $0x40] sm:$0xf]
    %v957 = vld [vmem:[#allocation8 + $0x44] sm:$0xf]
    %v958 = vld [vmem:[#allocation8 + $0x48] sm:$0xf]
    %v959 = vld [vmem:[#allocation8 + $0x4c] sm:$0xf]
    %v960 = vld [vmem:[#allocation8 + $0x50] sm:$0xf]
    %v961 = vld [vmem:[#allocation8 + $0x54] sm:$0xf]
    %v962 = vld [vmem:[#allocation8 + $0x58] sm:$0xf]
    %v963 = vld [vmem:[#allocation8 + $0x5c] sm:$0xf]
    %v964 = vld [vmem:[#allocation8 + $0x60] sm:$0xf]
    %v965 = vld [vmem:[#allocation8 + $0x64] sm:$0xf]
    %v966 = vld [vmem:[#allocation8 + $0x68] sm:$0xf]
    %v967 = vld [vmem:[#allocation8 + $0x6c] sm:$0xf]
    %v968 = vld [vmem:[#allocation8 + $0x70] sm:$0xf]
    %v969 = vld [vmem:[#allocation8 + $0x74] sm:$0xf]
    %v970 = vld [vmem:[#allocation8 + $0x78] sm:$0xf]
    %v971 = vld [vmem:[#allocation8 + $0x7c] sm:$0xf]
    %v972 = vld [vmem:[%s4] sm:$0x1]
    %v974 = vperm.slane %v972, 0
    %v1008 = vunpack.c.l.b16 %v940
    %v1009 = vunpack.c.l.b16 %v941
    %v1010 = vunpack.c.l.b16 %v942
    %v1011 = vunpack.c.l.b16 %v943
    %v1012 = vunpack.c.l.b16 %v944
    %v1013 = vunpack.c.l.b16 %v945
    %v1014 = vunpack.c.l.b16 %v946
    %v1015 = vunpack.c.l.b16 %v947
    %v1016 = vunpack.c.l.b16 %v948
    %v1017 = vunpack.c.l.b16 %v949
    %v1018 = vunpack.c.l.b16 %v950
    %v1019 = vunpack.c.l.b16 %v951
    %v1020 = vunpack.c.l.b16 %v952
    %v1021 = vunpack.c.l.b16 %v953
    %v1022 = vunpack.c.l.b16 %v954
    %v1023 = vunpack.c.l.b16 %v955
    %v1024 = vunpack.c.l.b16 %v956
    %v1025 = vunpack.c.l.b16 %v957
    %v1026 = vunpack.c.l.b16 %v958
    %v1027 = vunpack.c.l.b16 %v959
    %v1028 = vunpack.c.l.b16 %v960
    %v1029 = vunpack.c.l.b16 %v961
    %v1030 = vunpack.c.l.b16 %v962
    %v1031 = vunpack.c.l.b16 %v963
    %v1032 = vunpack.c.l.b16 %v964
    %v1033 = vunpack.c.l.b16 %v965
    %v1034 = vunpack.c.l.b16 %v966
    %v1035 = vunpack.c.l.b16 %v967
    %v1036 = vunpack.c.l.b16 %v968
    %v1037 = vunpack.c.l.b16 %v969
    %v1038 = vunpack.c.l.b16 %v970
    %v1039 = vunpack.c.l.b16 %v971
    %v1040 = vpack.c.b16 %v1009, %v1008
    %v1041 = vpack.c.b16 %v1011, %v1010
    %v1042 = vpack.c.b16 %v1013, %v1012
    %v1043 = vpack.c.b16 %v1015, %v1014
    %v1044 = vpack.c.b16 %v1017, %v1016
    %v1045 = vpack.c.b16 %v1019, %v1018
    %v1046 = vpack.c.b16 %v1021, %v1020
    %v1047 = vpack.c.b16 %v1023, %v1022
    %v1048 = vpack.c.b16 %v1025, %v1024
    %v1049 = vpack.c.b16 %v1027, %v1026
    %v1050 = vpack.c.b16 %v1029, %v1028
    %v1051 = vpack.c.b16 %v1031, %v1030
    %v1052 = vpack.c.b16 %v1033, %v1032
    %v1053 = vpack.c.b16 %v1035, %v1034
    %v1054 = vpack.c.b16 %v1037, %v1036
    %v1055 = vpack.c.b16 %v1039, %v1038
    %1072 = vmatpush.bf16.msra.mxu0 %v1047
    %1073 = vmatpush.bf16.msra.mxu0 %v1046
    %1074 = vmatpush.bf16.msra.mxu0 %v1045
    %1075 = vmatpush.bf16.msra.mxu0 %v1044
    %1076 = vmatpush.bf16.msra.mxu0 %v1043
    %1077 = vmatpush.bf16.msra.mxu0 %v1042
    %1078 = vmatpush.bf16.msra.mxu0 %v1041
    %1079 = vmatpush.bf16.msra.mxu0 %v1040
    %1080 = vmatmul.bf16.gmra.mxu0 %v938
    %v1081 = vpop.f32.mrf.mxu0
    %v1082 = vadd.f32 %v974, %v1081
    %v1083 = vpop.f32.mrf.mxu0
    %1084 = vdwg.mxu0
    %1085 = vmatpush.bf16.msra.mxu0 %v1055
    %1086 = vmatpush.bf16.msra.mxu0 %v1054
    %1087 = vmatpush.bf16.msra.mxu0 %v1053
    %1088 = vmatpush.bf16.msra.mxu0 %v1052
    %1089 = vmatpush.bf16.msra.mxu0 %v1051
    %1090 = vmatpush.bf16.msra.mxu0 %v1050
    %1091 = vmatpush.bf16.msra.mxu0 %v1049
    %1092 = vmatpush.bf16.msra.mxu0 %v1048
    %1093 = vmatmul.bf16.gmra.mxu0 %v939
    %v1094 = vpop.f32.mrf.mxu0
    %v1095 = vadd.f32 %v1082, %v1094
    %v1096 = vpop.f32.mrf.mxu0
    %1097 = vdwg.mxu0
    %v1098 = vmax.f32 %v1095, 0.0
    %v1099 = vpack.c.bf16 %v1098, %v1098
    %v1100 = vld [vmem:[#allocation10] sm:$0xf]
    %v1101 = vld [vmem:[#allocation10 + $0x4] sm:$0xf]
    %v1102 = vld [vmem:[#allocation10 + $0x8] sm:$0xf]
    %v1103 = vld [vmem:[#allocation10 + $0xc] sm:$0xf]
    %v1104 = vld [vmem:[#allocation10 + $0x10] sm:$0xf]
    %v1105 = vld [vmem:[#allocation10 + $0x14] sm:$0xf]
    %v1106 = vld [vmem:[#allocation10 + $0x18] sm:$0xf]
    %v1107 = vld [vmem:[#allocation10 + $0x1c] sm:$0xf]
    %v1108 = vld [vmem:[#allocation10 + $0x20] sm:$0xf]
    %v1109 = vld [vmem:[#allocation10 + $0x24] sm:$0xf]
    %v1110 = vld [vmem:[#allocation10 + $0x28] sm:$0xf]
    %v1111 = vld [vmem:[#allocation10 + $0x2c] sm:$0xf]
    %v1112 = vld [vmem:[#allocation10 + $0x30] sm:$0xf]
    %v1113 = vld [vmem:[#allocation10 + $0x34] sm:$0xf]
    %v1114 = vld [vmem:[#allocation10 + $0x38] sm:$0xf]
    %v1115 = vld [vmem:[#allocation10 + $0x3c] sm:$0xf]
    %v1116 = vld [vmem:[%s6] sm:$0x1]
    %v1118 = vperm.slane %v1116, 0
    %v1136 = vunpack.c.l.b16 %v1100
    %v1137 = vunpack.c.l.b16 %v1101
    %v1138 = vunpack.c.l.b16 %v1102
    %v1139 = vunpack.c.l.b16 %v1103
    %v1140 = vunpack.c.l.b16 %v1104
    %v1141 = vunpack.c.l.b16 %v1105
    %v1142 = vunpack.c.l.b16 %v1106
    %v1143 = vunpack.c.l.b16 %v1107
    %v1144 = vunpack.c.l.b16 %v1108
    %v1145 = vunpack.c.l.b16 %v1109
    %v1146 = vunpack.c.l.b16 %v1110
    %v1147 = vunpack.c.l.b16 %v1111
    %v1148 = vunpack.c.l.b16 %v1112
    %v1149 = vunpack.c.l.b16 %v1113
    %v1150 = vunpack.c.l.b16 %v1114
    %v1151 = vunpack.c.l.b16 %v1115
    %v1152 = vpack.c.b16 %v1137, %v1136
    %v1153 = vpack.c.b16 %v1139, %v1138
    %v1154 = vpack.c.b16 %v1141, %v1140
    %v1155 = vpack.c.b16 %v1143, %v1142
    %v1156 = vpack.c.b16 %v1145, %v1144
    %v1157 = vpack.c.b16 %v1147, %v1146
    %v1158 = vpack.c.b16 %v1149, %v1148
    %v1159 = vpack.c.b16 %v1151, %v1150
    %1168 = vmatpush.bf16.msra.mxu0 %v1159
    %1169 = vmatpush.bf16.msra.mxu0 %v1158
    %1170 = vmatpush.bf16.msra.mxu0 %v1157
    %1171 = vmatpush.bf16.msra.mxu0 %v1156
    %1172 = vmatpush.bf16.msra.mxu0 %v1155
    %1173 = vmatpush.bf16.msra.mxu0 %v1154
    %1174 = vmatpush.bf16.msra.mxu0 %v1153
    %1175 = vmatpush.bf16.msra.mxu0 %v1152
    %1176 = vmatmul.bf16.gmra.mxu0 %v1099
    %v1177 = vpop.f32.mrf.mxu0
    %v1178 = vadd.f32 %v1118, %v1177
    %v1179 = vpop.f32.mrf.mxu0
    %1180 = vdwg.mxu0
    %v1181 = vpack.c.bf16 %v1178, %v1178
    %v1183 = vrot.slane %v1181, 3
    %vm1184 = vcmask 1040384
    %v1187 = vsel %vm1184, %v1181, %v1183
    %vm1188 = vcmask 1041409
    %v1189 = vsel %vm1188, %v1181, %v1183
    %v1191 = vrot.slane %v1189, 1
    %vm1192 = vcmask 1042434
    %v1193 = vsel %vm1192, %v1181, %v1183
    %v1195 = vrot.slane %v1193, 2
    %vm1196 = vcmask 1043459
    %v1197 = vsel %vm1196, %v1181, %v1183
    %v1199 = vrot.slane %v1197, 3
    %1204 = vst [vmem:[#allocation11] sm:$0x1] %v1187
    %1205 = vst [vmem:[#allocation11 + $0x1] sm:$0x1] %v1191
    %1206 = vst [vmem:[#allocation11 + $0x2] sm:$0x1] %v1195
    %1207 = vst [vmem:[#allocation11 + $0x3] sm:$0x1] %v1199
    // Predicated region
    $region50: #{tpu_custom_call.1} parent=1 // pred_check
      _
    $region51: #{tpu_custom_call.1} parent=1 // pred_check_branch
      %1209 = sbr.rel (0) target = $region53
    $region52: #{tpu_custom_call.1} parent=1 // pred_region
      %1211 = vsyncadd [#allocation4], 48
      %s1212 = sshll.u32 [#allocation11], 4
      %s1213 = int_to_ptr.vmem [resolvable:$true] %s1212
      %s1214 = sshll.u32 %s7, 4
      %s1215 = int_to_ptr.hbm [resolvable:$true] %s1214
      %1220 = dma.vmem_to_hbm [thread:$0]  %s1213, 16, %s1215, [#allocation4], 16, 16, 1
    $region53: #{tpu_custom_call.1} parent=1 // pred_fallthru
      _
    // Predicated region
    $region54: #{tpu_custom_call.1} parent=1 // pred_check
      _
    $region55: #{tpu_custom_call.1} parent=1 // pred_check_branch
      %1222 = sbr.rel (0) target = $region57
    $region56: #{tpu_custom_call.1} parent=1 // pred_region
      %1224 = dma.done [#allocation4], 64
    $region57: #{tpu_custom_call.1} parent=1 // pred_fallthru
      _
    %1225 = vsyncpa [#allocation3], 1
    %1226 = vsyncpa [#allocation6], 1
    %1227 = vsyncpa [#allocation9], 1
    %1228 = vsyncpa [#allocation4], 1

</llo_original>
